<compile_context>
chip_gen: v7x
topology: tpu7x:2x2x1
jax: 0.10.0
libtpu: 0.0.40
codegen_flags: <defaults>
</compile_context>

<pallas_src>
import functools

import jax
import jax.numpy as jnp
from jax.experimental import pallas as pl
from jax.experimental.pallas import tpu as pltpu


def _rotary_kernel(inv_freq_ref, cos_ref, sin_ref):
    """Compute one seq-block of the rotary cos/sin tables.

    inv_freq_ref: (1, W) float32 in VMEM, resident for every block.
                  W == dim (full-width path) or dim//2 (half-width trig path).
    cos_ref/sin_ref: (block_seq, dim) output tiles.
    """
    i = pl.program_id(0)
    block_seq, dim = cos_ref.shape
    width = inv_freq_ref.shape[-1]

    # positions for this block: t[r] = i*block_seq + r (exact int math -> f32)
    row = jax.lax.broadcasted_iota(jnp.int32, (block_seq, width), 0)
    t = (row + i * block_seq).astype(jnp.float32)

    freqs = t * inv_freq_ref[...]                 # (block_seq, width), f32

    # cast BEFORE any concat: smaller live intermediates, fewer VPU casts
    c = jnp.cos(freqs).astype(cos_ref.dtype)
    s = jnp.sin(freqs).astype(sin_ref.dtype)

    if width == dim:
        # full-width path (dim//2 not lane-aligned): stores are already dense
        cos_ref[...] = c
        sin_ref[...] = s
    else:
        # half-width trig, lane-aligned duplicate: cos([f,f]) == [cos f, cos f]
        cos_ref[...] = jnp.concatenate([c, c], axis=-1)
        sin_ref[...] = jnp.concatenate([s, s], axis=-1)


@functools.partial(
    jax.jit, static_argnames=("seq_len", "dim", "block_seq", "out_dtype"))
def _rotary_tables(inv_freq, *, seq_len, dim, block_seq, out_dtype):
    """Returns (cos, sin), each [seq_len, 1, dim] in `out_dtype`."""
    width = inv_freq.shape[-1]
    n_blocks = pl.cdiv(seq_len, block_seq)

    cos2d, sin2d = pl.pallas_call(
        _rotary_kernel,
        out_shape=(
            jax.ShapeDtypeStruct((seq_len, dim), out_dtype),
            jax.ShapeDtypeStruct((seq_len, dim), out_dtype),
        ),
        grid_spec=pltpu.PrefetchScalarGridSpec(
            num_scalar_prefetch=0,
            grid=(n_blocks,),
            in_specs=[
                # tiny (1, W) inv_freq table, resident for every block
                pl.BlockSpec((1, width), lambda i: (0, 0)),
            ],
            out_specs=(
                pl.BlockSpec((block_seq, dim), lambda i: (i, 0)),
                pl.BlockSpec((block_seq, dim), lambda i: (i, 0)),
            ),
        ),
        compiler_params=pltpu.CompilerParams(
            # TODO(synk): verify on v7x that a single "parallel" seq axis shards
            # across both TensorCores; if not, switch to pltpu.CORE_PARALLEL.
            dimension_semantics=("parallel",),
            vmem_limit_bytes=32 << 20,
        ),
    )(inv_freq)

    # degenerate-dim reshape -> bitcast in XLA, no HBM copy
    return cos2d[:, None, :], sin2d[:, None, :]


def _pick_block_seq(seq_len, dim, out_bytes):
    """Large seq tile: multiple of 16 (bf16 sublane packing), capped so the
    double-buffered outputs PLUS the f32 working set stay well under scoped
    VMEM on all generations (v7x: 64 MiB physical / 32 MiB scoped)."""
    padded = max(16, ((seq_len + 15) // 16) * 16)
    # per-row bytes: 2 outputs x 2 pipeline buffers x dim x out_bytes
    #              + ~5 f32 intermediates (iota, t, freqs, cos, sin) x dim x 4B
    per_row = 2 * 2 * dim * out_bytes + 5 * dim * 4
    vmem_budget = 8 << 20
    max_rows = max(16, vmem_budget // per_row)
    bs = min(4096, padded, max_rows)
    return max(16, (bs // 16) * 16)


class RotaryEmbedding:
    """JAX/Pallas port of the ChatGLM RotaryEmbedding module."""

    def __init__(self, dim, base=10000, precision=jnp.float16, learnable=False):
        assert dim % 2 == 0
        self.dim = dim
        self.base = float(base)
        self.precision = precision
        self.learnable = learnable
        # torch.half tables have no native TPU vector dtype; store float32
        # instead (>= reference precision). precision==bfloat16 follows torch.
        self._out_dtype = jnp.bfloat16 if precision == jnp.bfloat16 else jnp.float32
        self._out_bytes = 2 if self._out_dtype == jnp.bfloat16 else 4

        # deterministic "parameter"/buffer init, exactly as in __init__.
        # Kept in float32 (torch rounds to fp16; f32 matches or exceeds it).
        exponents = jnp.arange(0, dim, 2, dtype=jnp.float32) / dim
        inv_freq = 1.0 / (self.base ** exponents)          # (dim//2,) f32
        self.inv_freq = inv_freq                            # buffer / "parameter"

        half = dim // 2
        if half % 128 == 0:
            # lane-aligned half-width trig path
            self._inv_freq_kernel = inv_freq.reshape(1, half)
        else:
            # pre-duplicate to full width: dense lanes, no in-kernel shuffles
            self._inv_freq_kernel = jnp.concatenate([inv_freq, inv_freq]).reshape(1, dim)

        self.max_seq_len_cached = None
        self.cos_cached = None
        self.sin_cached = None

    def _compute(self, seq_len):
        block_seq = _pick_block_seq(seq_len, self.dim, self._out_bytes)
        return _rotary_tables(
            self._inv_freq_kernel,
            seq_len=seq_len,
            dim=self.dim,
            block_seq=block_seq,
            out_dtype=self._out_dtype,
        )

    def __call__(self, x, seq_dim=1, seq_len=None):
        if seq_len is None:
            seq_len = x.shape[seq_dim]
        if self.learnable:
            # TODO(synk): gradients do not flow through the Pallas table
            # (no custom VJP); learnable path only recomputes per call.
            return self._compute(seq_len)
        if self.max_seq_len_cached is None or seq_len > self.max_seq_len_cached:
            self.max_seq_len_cached = seq_len
            self.cos_cached, self.sin_cached = self._compute(seq_len)
        return self.cos_cached[:seq_len, ...], self.sin_cached[:seq_len, ...]


def _reference_tables(seq_len, dim, base=10000.0):
    t = jnp.arange(seq_len, dtype=jnp.float32)
    inv_freq = 1.0 / (base ** (jnp.arange(0, dim, 2, dtype=jnp.float32) / dim))
    freqs = jnp.einsum("i,j->ij", t, inv_freq)
    emb = jnp.concatenate([freqs, freqs], axis=-1)
    return jnp.cos(emb)[:, None, :], jnp.sin(emb)[:, None, :]


if __name__ == "__main__":
    # x is [batch, seq, hidden]; the module only reads x.shape[seq_dim].
    key = jax.random.PRNGKey(0)
    batch, seq, hidden = 2, 8, 32
    x = jax.random.normal(key, (batch, seq, hidden), dtype=jnp.float32)

    # default precision (torch.half stand-in -> f32 tables), full-width path
    rope = RotaryEmbedding(dim=hidden)
    cos, sin = rope(x, seq_dim=1)
    cos = jax.block_until_ready(cos)
    sin = jax.block_until_ready(sin)

    cos_ref, sin_ref = _reference_tables(seq, hidden)
    assert cos.shape == (seq, 1, hidden) and sin.shape == (seq, 1, hidden)
    assert jnp.max(jnp.abs(cos.astype(jnp.float32) - cos_ref)) < 1e-2
    assert jnp.max(jnp.abs(sin.astype(jnp.float32) - sin_ref)) < 1e-2

    # second call hits the cache and must return the same tables
    cos2, sin2 = rope(x, seq_dim=1)
    assert jnp.array_equal(cos, cos2) and jnp.array_equal(sin, sin2)

    # half-width trig path (dim//2 == 128), bf16 precision, partial final block
    seq2, dim2 = 24, 256
    x2 = jax.random.normal(jax.random.PRNGKey(1), (1, seq2, dim2), dtype=jnp.float32)
    rope2 = RotaryEmbedding(dim=dim2, precision=jnp.bfloat16)
    cos_b, sin_b = rope2(x2, seq_dim=1)
    cos_b = jax.block_until_ready(cos_b)
    sin_b = jax.block_until_ready(sin_b)
    cr, sr = _reference_tables(seq2, dim2)
    assert cos_b.shape == (seq2, 1, dim2) and sin_b.shape == (seq2, 1, dim2)
    assert jnp.max(jnp.abs(cos_b.astype(jnp.float32) - cr)) < 2e-2
    assert jnp.max(jnp.abs(sin_b.astype(jnp.float32) - sr)) < 2e-2

    print("KERNEL_OK")
</pallas_src>

<mosaic_0001>
module attributes {stable_mosaic.version = 11 : i64} {
  func.func @_rotary_kernel(%arg0: i32, %arg1: memref<1x32xf32, #tpu.memory_space<vmem>>, %arg2: memref<16x32xf32, #tpu.memory_space<vmem>>, %arg3: memref<16x32xf32, #tpu.memory_space<vmem>>) attributes {dimension_semantics = [#tpu.dimension_semantics<parallel>], iteration_bounds = array<i64: 1>, scalar_prefetch = 0 : i64, scratch_operands = 0 : i64, tpu.core_type = #tpu.core_type<tc>, window_params = [{pipeline_mode = #tpu.pipeline_mode<synchronous>, transform_indices = @transform_0, window_bounds = array<i64: 1, 32>}, {transform_indices = @transform_1, window_bounds = array<i64: 16, 32>}, {transform_indices = @transform_2, window_bounds = array<i64: 16, 32>}]} {
    %0 = tpu.iota {dimensions = array<i32: 0>} : vector<16x32xi32>
    %c16_i32 = arith.constant 16 : i32
    %1 = arith.muli %arg0, %c16_i32 : i32
    %2 = vector.broadcast %1 : i32 to vector<16x32xi32>
    %3 = arith.addi %0, %2 : vector<16x32xi32>
    %4 = arith.sitofp %3 : vector<16x32xi32> to vector<16x32xf32>
    %c0 = arith.constant 0 : index
    %c0_0 = arith.constant 0 : index
    %5 = vector.load %arg1[%c0, %c0_0] : memref<1x32xf32, #tpu.memory_space<vmem>>, vector<1x32xf32>
    %6 = vector.broadcast %5 : vector<1x32xf32> to vector<16x32xf32>
    %7 = arith.mulf %4, %6 : vector<16x32xf32>
    %8 = math.cos %7 : vector<16x32xf32>
    %9 = math.sin %7 : vector<16x32xf32>
    %c0_1 = arith.constant 0 : index
    %c0_2 = arith.constant 0 : index
    %10 = vector.load %arg2[%c0_1, %c0_2] : memref<16x32xf32, #tpu.memory_space<vmem>>, vector<16x32xf32>
    tpu.vector_store %arg2[%c0_1, %c0_2], %8 {strides = array<i32>} : memref<16x32xf32, #tpu.memory_space<vmem>>, vector<16x32xf32>,
    %c0_3 = arith.constant 0 : index
    %c0_4 = arith.constant 0 : index
    %11 = vector.load %arg3[%c0_3, %c0_4] : memref<16x32xf32, #tpu.memory_space<vmem>>, vector<16x32xf32>
    tpu.vector_store %arg3[%c0_3, %c0_4], %9 {strides = array<i32>} : memref<16x32xf32, #tpu.memory_space<vmem>>, vector<16x32xf32>,
    return
  }
  func.func @transform_0(%arg0: i32) -> (i32, i32) {
    %c0_i32 = arith.constant 0 : i32
    %c0_i32_0 = arith.constant 0 : i32
    %c0_i32_1 = arith.constant 0 : i32
    return %c0_i32, %c0_i32_0 : i32, i32
  }
  func.func @transform_1(%arg0: i32) -> (i32, i32) {
    %c0_i32 = arith.constant 0 : i32
    %c0_i32_0 = arith.constant 0 : i32
    return %arg0, %c0_i32 : i32, i32
  }
  func.func @transform_2(%arg0: i32) -> (i32, i32) {
    %c0_i32 = arith.constant 0 : i32
    %c0_i32_0 = arith.constant 0 : i32
    return %arg0, %c0_i32 : i32, i32
  }
}

</mosaic_0001>

<llo_original>
// kernel: _rotary_tables.1
$region0: #{_rotary_tables.1}
  #allocation0 [shape = 'u32[]', space=smem, size = 0x4, offset = 0x4, fixed_abs, tag = 'smem constant byte address 0x4 - core index']
  #allocation1 [shape = 'u32[144,128]{1,0:T(1,128)}', space=vmem, size = 0x12000, scoped, tag = 'internal scratch']
  %s0 = inlined_call_operand.hbm [shape: f32[1,32], index: 0, kind: input, shape index: {}]
  %s1 = inlined_call_operand.hbm [shape: f32[8,32], index: 1, kind: output, shape index: {0}]
  %s2 = inlined_call_operand.hbm [shape: f32[8,32], index: 2, kind: output, shape index: {1}]
  %3 = xla_tuple %s1, %s2
  %s4 = sld [smem:[#allocation0]]
  $region26: #{_rotary_tables.1} parent=0
    _
  %s6 = ssub.s32 1, %s4
  %s7 = scalar_select 0, %s6, %s4
  $region1: #{_rotary_tables.1} parent=0
    #allocation2 [shape = 'u8[512]{0}', space=vmem, size = 0x400, scoped, tag = 'input window, operand 0, single buffered']
    #allocation3 [shape = 's32[1]{0}', space=sflag, size = 0x4, scoped, tag = 'scoped memory for _rotary_tables.1']
    #allocation4 [shape = 's32[1]{0}', space=sflag, size = 0x4, scoped, tag = 'scoped memory for _rotary_tables.1']
    #allocation5 [shape = 'u8[8192]{0}', space=vmem, size = 0x2000, scoped, tag = 'output window, operand 0, single buffered']
    #allocation6 [shape = 'u8[8192]{0}', space=vmem, size = 0x2000, scoped, tag = 'output window, operand 1, single buffered']
    #allocation7 [shape = 's32[1]{0}', space=sflag, size = 0x4, scoped, tag = 'scoped memory for _rotary_tables.1']
    %8 = vsyncpa [#allocation3], 0
    %9 = vsyncpa [#allocation4], 0
    %10 = vsyncpa [#allocation7], 0
    // Predicated region
    $region2: #{_rotary_tables.1} parent=1 // pred_check
      _
    $region3: #{_rotary_tables.1} parent=1 // pred_check_branch
      %12 = sbr.rel (0) target = $region5
    $region4: #{_rotary_tables.1} parent=1 // pred_region
      %s14 = ssub.s32 16, 16
      %15 = vsyncadd [#allocation3], %s14
      %s17 = sshll.u32 [#allocation2], 4
      %s18 = int_to_ptr.vmem [resolvable:$true] %s17
      %20 = dma.hbm_to_vmem [thread:$0]  %s0, 16, %s18, [#allocation3]
    $region5: #{_rotary_tables.1} parent=1 // pred_fallthru
      _
    // Predicated region
    $region6: #{_rotary_tables.1} parent=1 // pred_check
      _
    $region7: #{_rotary_tables.1} parent=1 // pred_check_branch
      %22 = sbr.rel (0) target = $region9
    $region8: #{_rotary_tables.1} parent=1 // pred_region
      %23 = dma.done [#allocation3], 16
    $region9: #{_rotary_tables.1} parent=1 // pred_fallthru
      _
    %v24 = vlaneseq
    %v25 = vshrl.u32 %v24, 7
    %v26 = vadd.s32 %v25, 8
    %s27 = smul.u32 0, 16
    %v28 = vstv %s27
    %v29 = vadd.s32 %v25, %v28
    %v30 = vadd.s32 %v26, %v28
    %v31 = vcvt.s32.f32 %v29
    %v32 = vcvt.s32.f32 %v30
    %v33 = vld [vmem:[#allocation2] sm:$0x1]
    %v35 = vlaneseq
    %v36 = vshrl.u32 %v35, 7
    %v37 = vsub.s32 0, %v36
    %v38 = vrot.slane %v33, %v37
    %v40 = vmul.f32 %v31, %v38
    %v41 = vmul.f32 %v32, %v38
    %v42 = vand.u32 2147483647, %v40
    %vm43 = vcmp.le.f32.partialorder %v42, 0.7853982
    %vm44 = vcmp.lt.s32.totalorder %v40, 0
    %v45 = vand.u32 %v40, 2139095040
    %v46 = vshrl.u32 %v45, 23
    %v47 = vsub.s32 %v46, 127
    %v48 = vand.u32 2147483647, %v40
    %v49 = vand.u32 %v48, 8388607
    %v50 = vor.u32 %v49, 8388608
    %v51 = vsub.s32 0, %v50
    %v52 = vadd.s32 %v47, 1
    %vm53 = vcmp.gt.s32.totalorder %v52, 0
    %v54 = vsel %vm53, %v52, 0
    %v55 = vshrl.u32 %v54, 5
    %v56 = vand.u32 %v54, 31
    %v57 = vsub.s32 32, %v56
    %v58 = vshrl.u32 683565275, %v57
    %v59 = vshll.u32 683565275, %v56
    %v60 = vshrl.u32 2475754826, %v57
    %v61 = vor.u32 %v59, %v60
    %v62 = vshll.u32 2475754826, %v56
    %v63 = vshrl.u32 2131351028, %v57
    %v64 = vor.u32 %v62, %v63
    %v65 = vshll.u32 2131351028, %v56
    %v66 = vshrl.u32 2102212464, %v57
    %v67 = vor.u32 %v65, %v66
    %v68 = vshll.u32 2102212464, %v56
    %v69 = vshrl.u32 920167782, %v57
    %v70 = vor.u32 %v68, %v69
    %v71 = vshll.u32 920167782, %v56
    %v72 = vshrl.u32 1326507024, %v57
    %v73 = vor.u32 %v71, %v72
    %vm74 = vcmp.lt.s32.totalorder %v55, 1
    %vm75 = vcmp.lt.s32.totalorder %v55, 2
    %vm76 = vcmp.lt.s32.totalorder %v55, 3
    %vm77 = vcmp.lt.s32.totalorder %v55, 4
    %v78 = vsel %vm74, %v58, %v61
    %v79 = vsel %vm77, %v67, 2102212464
    %v80 = vsel %vm76, %v64, %v79
    %v81 = vsel %vm75, %v78, %v80
    %v82 = vsel %vm74, %v61, %v64
    %v83 = vsel %vm77, %v70, 920167782
    %v84 = vsel %vm76, %v67, %v83
    %v85 = vsel %vm75, %v82, %v84
    %v86 = vsel %vm74, %v64, %v67
    %v87 = vsel %vm77, %v73, 1326507024
    %v88 = vsel %vm76, %v70, %v87
    %v89 = vsel %vm75, %v86, %v88
    %v90 = vshll.u32 %v50, 8
    %v91 = vmul.u32.u64.compose %v90, %v89
    %v92 = vextract.low.u32 %v91
    %v93 = vextract.high.u32 %v91
    %v94 = vmul.u32.u64.compose %v90, %v85
    %v95 = vextract.low.u32 %v94
    %v96 = vextract.high.u32 %v94
    %v97 = vmul.u32 %v90, %v81
    %v98 = vadd.s32 %v93, %v95
    %vm99 = vc.u32 %v93, %v95
    %v100 = vadd.s32 %v96, 1
    %v101 = vsel %vm99, %v100, %v96
    %v102 = vadd.s32 %v97, %v101
    %v103 = vadd.s32 %v102, 536870912
    %v104 = vshrl.u32 %v103, 30
    %v105 = vshll.u32 %v104, 30
    %v106 = vsub.s32 %v102, %v105
    %vm107 = vcmp.lt.s32.totalorder %v106, 0
    %v108 = vsub.s32 0, %v106
    %v109 = vsel %vm107, %v108, %v106
    %v110 = vclz %v109
    %v111 = vsub.s32 %v110, 2
    %vm112 = vcmp.gt.s32.totalorder 0, %v111
    %v113 = vsel %vm112, 0, %v111
    %v114 = vsub.s32 32, %v113
    %v115 = vshll.u32 %v106, %v113
    %v116 = vshrl.u32 %v98, %v114
    %v117 = vor.u32 %v115, %v116
    %v118 = vsub.s32 4294967266, %v113
    %v119 = vadd.s32 %v118, 127
    %v120 = vshll.u32 %v119, 23
    %v121 = vor.u32 4788187, %v120
    %v122 = vand.u32 2147483647, %v121
    %v124 = vcvt.s32.f32 %v117
    %v125 = vmul.f32 %v124, %v122
    %v126 = vxor.u32 %v125, 2147483648
    %v127 = vsel %vm44, %v126, %v125
    %v128 = vsub.s32 4, %v104
    %v129 = vsel %vm44, %v128, %v104
    %v130 = vsel %vm43, %v40, %v127
    %v131 = vsel %vm43, 0, %v129
    %v132 = vcosq.f32.pop %v130
    %v133 = vsinq.f32.pop %v130
    %vm134 = vweird.f32 %v40
    %v135 = vand.u32 %v131, 3
    %vm136 = vcmp.lt.s32.totalorder %v135, 2
    %vm137 = vcmp.eq.s32.totalorder %v135, 0
    %v138 = vxor.u32 %v133, 2147483648
    %v139 = vsel %vm137, %v132, %v138
    %vm140 = vcmp.eq.s32.totalorder %v135, 2
    %v141 = vxor.u32 %v132, 2147483648
    %v142 = vsel %vm140, %v141, %v133
    %v143 = vsel %vm136, %v139, %v142
    %v144 = vsel %vm134, nan, %v143
    %v145 = vand.u32 2147483647, %v41
    %vm146 = vcmp.le.f32.partialorder %v145, 0.7853982
    %vm147 = vcmp.lt.s32.totalorder %v41, 0
    %v148 = vand.u32 %v41, 2139095040
    %v149 = vshrl.u32 %v148, 23
    %v150 = vsub.s32 %v149, 127
    %v151 = vand.u32 2147483647, %v41
    %v152 = vand.u32 %v151, 8388607
    %v153 = vor.u32 %v152, 8388608
    %v154 = vsub.s32 0, %v153
    %v155 = vadd.s32 %v150, 1
    %vm156 = vcmp.gt.s32.totalorder %v155, 0
    %v157 = vsel %vm156, %v155, 0
    %v158 = vshrl.u32 %v157, 5
    %v159 = vand.u32 %v157, 31
    %v160 = vsub.s32 32, %v159
    %v161 = vshrl.u32 683565275, %v160
    %v162 = vshll.u32 683565275, %v159
    %v163 = vshrl.u32 2475754826, %v160
    %v164 = vor.u32 %v162, %v163
    %v165 = vshll.u32 2475754826, %v159
    %v166 = vshrl.u32 2131351028, %v160
    %v167 = vor.u32 %v165, %v166
    %v168 = vshll.u32 2131351028, %v159
    %v169 = vshrl.u32 2102212464, %v160
    %v170 = vor.u32 %v168, %v169
    %v171 = vshll.u32 2102212464, %v159
    %v172 = vshrl.u32 920167782, %v160
    %v173 = vor.u32 %v171, %v172
    %v174 = vshll.u32 920167782, %v159
    %v175 = vshrl.u32 1326507024, %v160
    %v176 = vor.u32 %v174, %v175
    %vm177 = vcmp.lt.s32.totalorder %v158, 1
    %vm178 = vcmp.lt.s32.totalorder %v158, 2
    %vm179 = vcmp.lt.s32.totalorder %v158, 3
    %vm180 = vcmp.lt.s32.totalorder %v158, 4
    %v181 = vsel %vm177, %v161, %v164
    %v182 = vsel %vm180, %v170, 2102212464
    %v183 = vsel %vm179, %v167, %v182
    %v184 = vsel %vm178, %v181, %v183
    %v185 = vsel %vm177, %v164, %v167
    %v186 = vsel %vm180, %v173, 920167782
    %v187 = vsel %vm179, %v170, %v186
    %v188 = vsel %vm178, %v185, %v187
    %v189 = vsel %vm177, %v167, %v170
    %v190 = vsel %vm180, %v176, 1326507024
    %v191 = vsel %vm179, %v173, %v190
    %v192 = vsel %vm178, %v189, %v191
    %v193 = vshll.u32 %v153, 8
    %v194 = vmul.u32.u64.compose %v193, %v192
    %v195 = vextract.low.u32 %v194
    %v196 = vextract.high.u32 %v194
    %v197 = vmul.u32.u64.compose %v193, %v188
    %v198 = vextract.low.u32 %v197
    %v199 = vextract.high.u32 %v197
    %v200 = vmul.u32 %v193, %v184
    %v201 = vadd.s32 %v196, %v198
    %vm202 = vc.u32 %v196, %v198
    %v203 = vadd.s32 %v199, 1
    %v204 = vsel %vm202, %v203, %v199
    %v205 = vadd.s32 %v200, %v204
    %v206 = vadd.s32 %v205, 536870912
    %v207 = vshrl.u32 %v206, 30
    %v208 = vshll.u32 %v207, 30
    %v209 = vsub.s32 %v205, %v208
    %vm210 = vcmp.lt.s32.totalorder %v209, 0
    %v211 = vsub.s32 0, %v209
    %v212 = vsel %vm210, %v211, %v209
    %v213 = vclz %v212
    %v214 = vsub.s32 %v213, 2
    %vm215 = vcmp.gt.s32.totalorder 0, %v214
    %v216 = vsel %vm215, 0, %v214
    %v217 = vsub.s32 32, %v216
    %v218 = vshll.u32 %v209, %v216
    %v219 = vshrl.u32 %v201, %v217
    %v220 = vor.u32 %v218, %v219
    %v221 = vsub.s32 4294967266, %v216
    %v222 = vadd.s32 %v221, 127
    %v223 = vshll.u32 %v222, 23
    %v224 = vor.u32 4788187, %v223
    %v225 = vand.u32 2147483647, %v224
    %v227 = vcvt.s32.f32 %v220
    %v228 = vmul.f32 %v227, %v225
    %v229 = vxor.u32 %v228, 2147483648
    %v230 = vsel %vm147, %v229, %v228
    %v231 = vsub.s32 4, %v207
    %v232 = vsel %vm147, %v231, %v207
    %v233 = vsel %vm146, %v41, %v230
    %v234 = vsel %vm146, 0, %v232
    %v235 = vcosq.f32.pop %v233
    %v236 = vsinq.f32.pop %v233
    %vm237 = vweird.f32 %v41
    %v238 = vand.u32 %v234, 3
    %vm239 = vcmp.lt.s32.totalorder %v238, 2
    %vm240 = vcmp.eq.s32.totalorder %v238, 0
    %v241 = vxor.u32 %v236, 2147483648
    %v242 = vsel %vm240, %v235, %v241
    %vm243 = vcmp.eq.s32.totalorder %v238, 2
    %v244 = vxor.u32 %v235, 2147483648
    %v245 = vsel %vm243, %v244, %v236
    %v246 = vsel %vm239, %v242, %v245
    %v247 = vsel %vm237, nan, %v246
    %v248 = vand.u32 2147483647, %v40
    %vm249 = vcmp.le.f32.partialorder %v248, 0.7853982
    %vm250 = vcmp.lt.s32.totalorder %v40, 0
    %v251 = vand.u32 %v40, 2139095040
    %v252 = vshrl.u32 %v251, 23
    %v253 = vsub.s32 %v252, 127
    %v254 = vand.u32 2147483647, %v40
    %v255 = vand.u32 %v254, 8388607
    %v256 = vor.u32 %v255, 8388608
    %v257 = vsub.s32 0, %v256
    %v258 = vadd.s32 %v253, 1
    %vm259 = vcmp.gt.s32.totalorder %v258, 0
    %v260 = vsel %vm259, %v258, 0
    %v261 = vshrl.u32 %v260, 5
    %v262 = vand.u32 %v260, 31
    %v263 = vsub.s32 32, %v262
    %v264 = vshrl.u32 683565275, %v263
    %v265 = vshll.u32 683565275, %v262
    %v266 = vshrl.u32 2475754826, %v263
    %v267 = vor.u32 %v265, %v266
    %v268 = vshll.u32 2475754826, %v262
    %v269 = vshrl.u32 2131351028, %v263
    %v270 = vor.u32 %v268, %v269
    %v271 = vshll.u32 2131351028, %v262
    %v272 = vshrl.u32 2102212464, %v263
    %v273 = vor.u32 %v271, %v272
    %v274 = vshll.u32 2102212464, %v262
    %v275 = vshrl.u32 920167782, %v263
    %v276 = vor.u32 %v274, %v275
    %v277 = vshll.u32 920167782, %v262
    %v278 = vshrl.u32 1326507024, %v263
    %v279 = vor.u32 %v277, %v278
    %vm280 = vcmp.lt.s32.totalorder %v261, 1
    %vm281 = vcmp.lt.s32.totalorder %v261, 2
    %vm282 = vcmp.lt.s32.totalorder %v261, 3
    %vm283 = vcmp.lt.s32.totalorder %v261, 4
    %v284 = vsel %vm280, %v264, %v267
    %v285 = vsel %vm283, %v273, 2102212464
    %v286 = vsel %vm282, %v270, %v285
    %v287 = vsel %vm281, %v284, %v286
    %v288 = vsel %vm280, %v267, %v270
    %v289 = vsel %vm283, %v276, 920167782
    %v290 = vsel %vm282, %v273, %v289
    %v291 = vsel %vm281, %v288, %v290
    %v292 = vsel %vm280, %v270, %v273
    %v293 = vsel %vm283, %v279, 1326507024
    %v294 = vsel %vm282, %v276, %v293
    %v295 = vsel %vm281, %v292, %v294
    %v296 = vshll.u32 %v256, 8
    %v297 = vmul.u32.u64.compose %v296, %v295
    %v298 = vextract.low.u32 %v297
    %v299 = vextract.high.u32 %v297
    %v300 = vmul.u32.u64.compose %v296, %v291
    %v301 = vextract.low.u32 %v300
    %v302 = vextract.high.u32 %v300
    %v303 = vmul.u32 %v296, %v287
    %v304 = vadd.s32 %v299, %v301
    %vm305 = vc.u32 %v299, %v301
    %v306 = vadd.s32 %v302, 1
    %v307 = vsel %vm305, %v306, %v302
    %v308 = vadd.s32 %v303, %v307
    %v309 = vadd.s32 %v308, 536870912
    %v310 = vshrl.u32 %v309, 30
    %v311 = vshll.u32 %v310, 30
    %v312 = vsub.s32 %v308, %v311
    %vm313 = vcmp.lt.s32.totalorder %v312, 0
    %v314 = vsub.s32 0, %v312
    %v315 = vsel %vm313, %v314, %v312
    %v316 = vclz %v315
    %v317 = vsub.s32 %v316, 2
    %vm318 = vcmp.gt.s32.totalorder 0, %v317
    %v319 = vsel %vm318, 0, %v317
    %v320 = vsub.s32 32, %v319
    %v321 = vshll.u32 %v312, %v319
    %v322 = vshrl.u32 %v304, %v320
    %v323 = vor.u32 %v321, %v322
    %v324 = vsub.s32 4294967266, %v319
    %v325 = vadd.s32 %v324, 127
    %v326 = vshll.u32 %v325, 23
    %v327 = vor.u32 4788187, %v326
    %v328 = vand.u32 2147483647, %v327
    %v330 = vcvt.s32.f32 %v323
    %v331 = vmul.f32 %v330, %v328
    %v332 = vxor.u32 %v331, 2147483648
    %v333 = vsel %vm250, %v332, %v331
    %v334 = vsub.s32 4, %v310
    %v335 = vsel %vm250, %v334, %v310
    %v336 = vsel %vm249, %v40, %v333
    %v337 = vsel %vm249, 0, %v335
    %v338 = vcosq.f32.pop %v336
    %v339 = vsinq.f32.pop %v336
    %vm340 = vweird.f32 %v40
    %v341 = vadd.s32 %v337, 3
    %v342 = vand.u32 %v341, 3
    %vm343 = vcmp.lt.s32.totalorder %v342, 2
    %vm344 = vcmp.eq.s32.totalorder %v342, 0
    %v345 = vxor.u32 %v339, 2147483648
    %v346 = vsel %vm344, %v338, %v345
    %vm347 = vcmp.eq.s32.totalorder %v342, 2
    %v348 = vxor.u32 %v338, 2147483648
    %v349 = vsel %vm347, %v348, %v339
    %v350 = vsel %vm343, %v346, %v349
    %v351 = vsel %vm340, nan, %v350
    %v352 = vand.u32 2147483647, %v41
    %vm353 = vcmp.le.f32.partialorder %v352, 0.7853982
    %vm354 = vcmp.lt.s32.totalorder %v41, 0
    %v355 = vand.u32 %v41, 2139095040
    %v356 = vshrl.u32 %v355, 23
    %v357 = vsub.s32 %v356, 127
    %v358 = vand.u32 2147483647, %v41
    %v359 = vand.u32 %v358, 8388607
    %v360 = vor.u32 %v359, 8388608
    %v361 = vsub.s32 0, %v360
    %v362 = vadd.s32 %v357, 1
    %vm363 = vcmp.gt.s32.totalorder %v362, 0
    %v364 = vsel %vm363, %v362, 0
    %v365 = vshrl.u32 %v364, 5
    %v366 = vand.u32 %v364, 31
    %v367 = vsub.s32 32, %v366
    %v368 = vshrl.u32 683565275, %v367
    %v369 = vshll.u32 683565275, %v366
    %v370 = vshrl.u32 2475754826, %v367
    %v371 = vor.u32 %v369, %v370
    %v372 = vshll.u32 2475754826, %v366
    %v373 = vshrl.u32 2131351028, %v367
    %v374 = vor.u32 %v372, %v373
    %v375 = vshll.u32 2131351028, %v366
    %v376 = vshrl.u32 2102212464, %v367
    %v377 = vor.u32 %v375, %v376
    %v378 = vshll.u32 2102212464, %v366
    %v379 = vshrl.u32 920167782, %v367
    %v380 = vor.u32 %v378, %v379
    %v381 = vshll.u32 920167782, %v366
    %v382 = vshrl.u32 1326507024, %v367
    %v383 = vor.u32 %v381, %v382
    %vm384 = vcmp.lt.s32.totalorder %v365, 1
    %vm385 = vcmp.lt.s32.totalorder %v365, 2
    %vm386 = vcmp.lt.s32.totalorder %v365, 3
    %vm387 = vcmp.lt.s32.totalorder %v365, 4
    %v388 = vsel %vm384, %v368, %v371
    %v389 = vsel %vm387, %v377, 2102212464
    %v390 = vsel %vm386, %v374, %v389
    %v391 = vsel %vm385, %v388, %v390
    %v392 = vsel %vm384, %v371, %v374
    %v393 = vsel %vm387, %v380, 920167782
    %v394 = vsel %vm386, %v377, %v393
    %v395 = vsel %vm385, %v392, %v394
    %v396 = vsel %vm384, %v374, %v377
    %v397 = vsel %vm387, %v383, 1326507024
    %v398 = vsel %vm386, %v380, %v397
    %v399 = vsel %vm385, %v396, %v398
    %v400 = vshll.u32 %v360, 8
    %v401 = vmul.u32.u64.compose %v400, %v399
    %v402 = vextract.low.u32 %v401
    %v403 = vextract.high.u32 %v401
    %v404 = vmul.u32.u64.compose %v400, %v395
    %v405 = vextract.low.u32 %v404
    %v406 = vextract.high.u32 %v404
    %v407 = vmul.u32 %v400, %v391
    %v408 = vadd.s32 %v403, %v405
    %vm409 = vc.u32 %v403, %v405
    %v410 = vadd.s32 %v406, 1
    %v411 = vsel %vm409, %v410, %v406
    %v412 = vadd.s32 %v407, %v411
    %v413 = vadd.s32 %v412, 536870912
    %v414 = vshrl.u32 %v413, 30
    %v415 = vshll.u32 %v414, 30
    %v416 = vsub.s32 %v412, %v415
    %vm417 = vcmp.lt.s32.totalorder %v416, 0
    %v418 = vsub.s32 0, %v416
    %v419 = vsel %vm417, %v418, %v416
    %v420 = vclz %v419
    %v421 = vsub.s32 %v420, 2
    %vm422 = vcmp.gt.s32.totalorder 0, %v421
    %v423 = vsel %vm422, 0, %v421
    %v424 = vsub.s32 32, %v423
    %v425 = vshll.u32 %v416, %v423
    %v426 = vshrl.u32 %v408, %v424
    %v427 = vor.u32 %v425, %v426
    %v428 = vsub.s32 4294967266, %v423
    %v429 = vadd.s32 %v428, 127
    %v430 = vshll.u32 %v429, 23
    %v431 = vor.u32 4788187, %v430
    %v432 = vand.u32 2147483647, %v431
    %v434 = vcvt.s32.f32 %v427
    %v435 = vmul.f32 %v434, %v432
    %v436 = vxor.u32 %v435, 2147483648
    %v437 = vsel %vm354, %v436, %v435
    %v438 = vsub.s32 4, %v414
    %v439 = vsel %vm354, %v438, %v414
    %v440 = vsel %vm353, %v41, %v437
    %v441 = vsel %vm353, 0, %v439
    %v442 = vcosq.f32.pop %v440
    %v443 = vsinq.f32.pop %v440
    %vm444 = vweird.f32 %v41
    %v445 = vadd.s32 %v441, 3
    %v446 = vand.u32 %v445, 3
    %vm447 = vcmp.lt.s32.totalorder %v446, 2
    %vm448 = vcmp.eq.s32.totalorder %v446, 0
    %v449 = vxor.u32 %v443, 2147483648
    %v450 = vsel %vm448, %v442, %v449
    %vm451 = vcmp.eq.s32.totalorder %v446, 2
    %v452 = vxor.u32 %v442, 2147483648
    %v453 = vsel %vm451, %v452, %v443
    %v454 = vsel %vm447, %v450, %v453
    %v455 = vsel %vm444, nan, %v454
    %vm456 = vcmask 261120
    %457 = vst.msk [vmem:[#allocation5] sm:$0xff] %vm456, %v144
    %458 = vst.msk [vmem:[#allocation5 + $0x8] sm:$0xff] %vm456, %v247
    %459 = vst.msk [vmem:[#allocation6] sm:$0xff] %vm456, %v351
    %460 = vst.msk [vmem:[#allocation6 + $0x8] sm:$0xff] %vm456, %v455
    // Predicated region
    $region10: #{_rotary_tables.1} parent=1 // pred_check
      _
    $region11: #{_rotary_tables.1} parent=1 // pred_check_branch
      %462 = sbr.rel (0) target = $region13
    $region12: #{_rotary_tables.1} parent=1 // pred_region
      %s464 = ssub.s32 256, 128
      %465 = vsyncadd [#allocation4], %s464
      %s466 = sshll.u32 [#allocation5], 4
      %s467 = int_to_ptr.vmem [resolvable:$true] %s466
      %472 = dma.vmem_to_hbm [thread:$0]  %s467, 128, %s1, [#allocation4], 128, 128, 8
    $region13: #{_rotary_tables.1} parent=1 // pred_fallthru
      _
    // Predicated region
    $region14: #{_rotary_tables.1} parent=1 // pred_check
      _
    $region15: #{_rotary_tables.1} parent=1 // pred_check_branch
      %474 = sbr.rel (0) target = $region17
    $region16: #{_rotary_tables.1} parent=1 // pred_region
      %s476 = ssub.s32 256, 128
      %477 = vsyncadd [#allocation7], %s476
      %s478 = sshll.u32 [#allocation6], 4
      %s479 = int_to_ptr.vmem [resolvable:$true] %s478
      %484 = dma.vmem_to_hbm [thread:$0]  %s479, 128, %s2, [#allocation7], 128, 128, 8
    $region17: #{_rotary_tables.1} parent=1 // pred_fallthru
      _
    // Predicated region
    $region18: #{_rotary_tables.1} parent=1 // pred_check
      _
    $region19: #{_rotary_tables.1} parent=1 // pred_check_branch
      %486 = sbr.rel (0) target = $region21
    $region20: #{_rotary_tables.1} parent=1 // pred_region
      %487 = dma.done [#allocation4], 256
    $region21: #{_rotary_tables.1} parent=1 // pred_fallthru
      _
    // Predicated region
    $region22: #{_rotary_tables.1} parent=1 // pred_check
      _
    $region23: #{_rotary_tables.1} parent=1 // pred_check_branch
      %489 = sbr.rel (0) target = $region25
    $region24: #{_rotary_tables.1} parent=1 // pred_region
      %490 = dma.done [#allocation7], 256
    $region25: #{_rotary_tables.1} parent=1 // pred_fallthru
      _
    %491 = vsyncpa [#allocation3], 1
    %492 = vsyncpa [#allocation4], 1
    %493 = vsyncpa [#allocation7], 1

</llo_original>
